<compile_context>
chip_gen: v6e
topology: v6e:2x2x1
jax: 0.10.0
libtpu: 0.0.40
codegen_flags: <defaults>
</compile_context>

<pallas_src>
import functools

import jax
import jax.numpy as jnp
from jax.experimental import pallas as pl
from jax.experimental.pallas import tpu as pltpu

_HEAD_LANES = 128   # lane-dense width for the fused head matmul / output slab
_NEG_BIG = -1e30    # finite -inf stand-in for the online softmax


def _round_up(x, m):
    return ((x + m - 1) // m) * m


def _wsi_kernel(x_ref,
                w1_ref, b1_ref, w2_ref, b2_ref,     # tail (resident)
                wh_ref, bh_ref,                     # fused head [Wp | Wa1 | 0]
                wa2_ref, ba2_ref,                   # attention 2nd layer (row form)
                wc_ref, bc_ref,                     # bag classifier
                y_ref, head_ref,                    # outputs
                m_ref, l_ref, acc_ref,              # online-softmax carry (VMEM scratch)
                *, n_valid):
    i = pl.program_id(0)
    tile_n = x_ref.shape[0]
    n_class = wc_ref.shape[1]
    mxu_dt = w1_ref.dtype

    @pl.when(i == 0)
    def _init():
        m_ref[...] = jnp.full((1, 1), _NEG_BIG, jnp.float32)
        l_ref[...] = jnp.zeros((1, 1), jnp.float32)
        acc_ref[...] = jnp.zeros_like(acc_ref)

    # ---- tail: Linear -> ReLU -> Linear -> ReLU (MXU, f32 accumulation) ----
    x = x_ref[...]                                                      # (tile_n, feat_dim)
    h1 = jnp.dot(x, w1_ref[...], preferred_element_type=jnp.float32) + b1_ref[...]
    h1 = jnp.maximum(h1, 0.0)
    h = jnp.dot(h1.astype(mxu_dt), w2_ref[...],
                preferred_element_type=jnp.float32) + b2_ref[...]
    h = jnp.maximum(h, 0.0)                                             # (tile_n, L) f32

    # ---- fused lane-dense head: cols [0:n_class]=xp, [n_class:n_class+D]=a1_pre ----
    fused = jnp.dot(h.astype(mxu_dt), wh_ref[...],
                    preferred_element_type=jnp.float32) + bh_ref[...]   # (tile_n, 128)

    # Attention second layer as VPU broadcast-multiply + lane reduce (no 1-lane
    # MXU matmul). wa2_ref is zero outside the a1 columns, so tanh over the full
    # 128 lanes is safe and avoids any lane slicing.
    au = jnp.sum(jnp.tanh(fused) * wa2_ref[...],
                 axis=-1, keepdims=True) + ba2_ref[...]                 # (tile_n, 1)

    # ---- per-patch output slab: cols [0:n_class] = xp, col n_class = A_unnorm ----
    col = jax.lax.broadcasted_iota(jnp.int32, (tile_n, _HEAD_LANES), 1)
    head_ref[...] = (jnp.where(col < n_class, fused, 0.0)
                     + jnp.where(col == n_class, au, 0.0))

    # ---- online softmax over the patch axis (mask rows padded past N) ----
    row = jax.lax.broadcasted_iota(jnp.int32, (tile_n, 1), 0) + i * tile_n
    au_m = jnp.where(row < n_valid, au, _NEG_BIG)                       # (tile_n, 1)

    m_prev = m_ref[...]
    m_new = jnp.maximum(m_prev, jnp.max(au_m, axis=0, keepdims=True))   # (1, 1)
    corr = jnp.exp(m_prev - m_new)                                      # (1, 1)
    e = jnp.exp(au_m - m_new)                                           # padded rows -> 0
    l_ref[...] = corr * l_ref[...] + jnp.sum(e, axis=0, keepdims=True)
    acc_ref[...] = corr * acc_ref[...] + jnp.sum(e * h, axis=0, keepdims=True)
    m_ref[...] = m_new

    # ---- finalize: deferred normalization + bag classifier ----
    @pl.when(i == pl.num_programs(0) - 1)
    def _finalize():
        # approx=False keeps the result within f32-rounding of the reference.
        M = acc_ref[...] * pl.reciprocal(l_ref[...], approx=False)      # (1, L)
        y_ref[...] = (jnp.dot(M.astype(mxu_dt), wc_ref[...],
                              preferred_element_type=jnp.float32) + bc_ref[...])


def wsi_feat_classifier(x, params, *, tile_n=1024, use_bf16=False):
    """x: (1, N, feat_dim) — mirrors the PyTorch module's x.squeeze(0).

    Returns (Y_prob (1, n_class), xp (N, n_class), A_unnorm (N, 1)), all f32.
    """
    x2 = jnp.squeeze(x, axis=0).astype(jnp.float32)                     # (N, feat_dim)
    n, feat_dim = x2.shape
    L = params["w2"].shape[1]
    D = params["wa1"].shape[1]
    n_class = params["wc"].shape[1]
    assert n_class + D + 1 <= _HEAD_LANES

    # ---- patch-axis tiling (pad N up to a multiple of the tile) ----
    row_align = 16 if use_bf16 else 8
    tile = max(row_align,
               min(_round_up(tile_n, row_align), _round_up(n, row_align)))
    n_pad = _round_up(n, tile)
    if n_pad != n:
        x2 = jnp.pad(x2, ((0, n_pad - n), (0, 0)))
    num_tiles = n_pad // tile

    mxu_dt = jnp.bfloat16 if use_bf16 else jnp.float32

    # ---- fused, lane-dense head parameters: [Wp | Wa1 | 0] ----
    w_head = jnp.zeros((L, _HEAD_LANES), jnp.float32)
    w_head = w_head.at[:, :n_class].set(params["wp"])
    w_head = w_head.at[:, n_class:n_class + D].set(params["wa1"])
    b_head = jnp.zeros((1, _HEAD_LANES), jnp.float32)
    b_head = b_head.at[:, :n_class].set(params["bp"])
    b_head = b_head.at[:, n_class:n_class + D].set(params["ba1"])
    wa2_row = jnp.zeros((1, _HEAD_LANES), jnp.float32)
    wa2_row = wa2_row.at[:, n_class:n_class + D].set(params["wa2"][:, 0])

    args = (
        x2.astype(mxu_dt),
        params["w1"].astype(mxu_dt), params["b1"].astype(jnp.float32),
        params["w2"].astype(mxu_dt), params["b2"].astype(jnp.float32),
        w_head.astype(mxu_dt), b_head,
        wa2_row, params["ba2"].astype(jnp.float32),
        params["wc"].astype(mxu_dt), params["bc"].astype(jnp.float32),
    )

    def const(shape):   # weights/biases stay resident across the whole grid
        return pl.BlockSpec(shape, lambda i: (0, 0))

    in_specs = [
        pl.BlockSpec((tile, feat_dim), lambda i: (i, 0)),               # x: streamed per tile
        const(args[1].shape), const(args[2].shape),
        const(args[3].shape), const(args[4].shape),
        const(args[5].shape), const(args[6].shape),
        const(args[7].shape), const(args[8].shape),
        const(args[9].shape), const(args[10].shape),
    ]
    out_specs = (
        pl.BlockSpec((1, n_class), lambda i: (0, 0)),                   # Y_prob (written last step)
        pl.BlockSpec((tile, _HEAD_LANES), lambda i: (i, 0)),            # lane-dense per-patch slab
    )
    out_shapes = (
        jax.ShapeDtypeStruct((1, n_class), jnp.float32),
        jax.ShapeDtypeStruct((n_pad, _HEAD_LANES), jnp.float32),
    )

    itemsize = 2 if use_bf16 else 4
    flops = (2 * n_pad * (feat_dim * 256 + 256 * L + L * _HEAD_LANES + L + 1)
             + 2 * L * n_class)
    bytes_accessed = (n_pad * feat_dim * itemsize                        # x stream
                      + sum(int(a.size) * a.dtype.itemsize for a in args[1:])
                      + n_pad * _HEAD_LANES * 4 + n_class * 4)           # outputs
    cost = pl.CostEstimate(flops=int(flops),
                           transcendentals=int(n_pad * (_HEAD_LANES + 2)),
                           bytes_accessed=int(bytes_accessed))

    y_prob, head = pl.pallas_call(
        functools.partial(_wsi_kernel, n_valid=n),
        out_shape=out_shapes,
        grid_spec=pltpu.PrefetchScalarGridSpec(
            num_scalar_prefetch=0,
            grid=(num_tiles,),
            in_specs=in_specs,
            out_specs=out_specs,
            scratch_shapes=[
                pltpu.VMEM((1, 1), jnp.float32),    # running max m
                pltpu.VMEM((1, 1), jnp.float32),    # running denom l
                pltpu.VMEM((1, L), jnp.float32),    # running acc = sum exp(au-m)*h
            ]),
        compiler_params=pltpu.CompilerParams(
            # The online-softmax carry serializes the single grid axis.
            # TODO(synk): split the patch axis into 2 per-core partial (m, l, acc)
            # reductions + an epilogue merge to exploit both v7x TensorCores.
            dimension_semantics=("arbitrary",)),
        cost_estimate=cost,
    )(*args)

    xp = head[:n, :n_class]
    a_unnorm = head[:n, n_class:n_class + 1]
    return y_prob, xp, a_unnorm


def init_params(key, feat_dim=32, n_class=2, L=64, D=32):
    """Deterministic synthetic weights. Linear weights stored as (in, out)."""
    ks = jax.random.split(key, 7)
    s = 0.05
    return {
        "w1":  s * jax.random.normal(ks[0], (feat_dim, 256), jnp.float32),
        "b1":  jnp.zeros((1, 256), jnp.float32),
        "w2":  s * jax.random.normal(ks[1], (256, L), jnp.float32),
        "b2":  jnp.zeros((1, L), jnp.float32),
        "wp":  s * jax.random.normal(ks[2], (L, n_class), jnp.float32),
        "bp":  jnp.zeros((1, n_class), jnp.float32),
        "wa1": s * jax.random.normal(ks[3], (L, D), jnp.float32),
        "ba1": jnp.zeros((1, D), jnp.float32),
        "wa2": s * jax.random.normal(ks[4], (D, 1), jnp.float32),
        "ba2": jnp.zeros((1, 1), jnp.float32),
        "wc":  s * jax.random.normal(ks[5], (L, n_class), jnp.float32),
        "bc":  jnp.zeros((1, n_class), jnp.float32),
    }


def _ref_forward(x, p):
    """Pure-JAX reference for correctness checking."""
    x2 = jnp.squeeze(x, axis=0)
    h = jnp.maximum(x2 @ p["w1"] + p["b1"], 0.0)
    h = jnp.maximum(h @ p["w2"] + p["b2"], 0.0)
    xp = h @ p["wp"] + p["bp"]
    au = jnp.tanh(h @ p["wa1"] + p["ba1"]) @ p["wa2"] + p["ba2"]
    a = jax.nn.softmax(au.T, axis=1)
    m = a @ h
    y = m @ p["wc"] + p["bc"]
    return y, xp, au


if __name__ == "__main__":
    key = jax.random.PRNGKey(0)
    k_x, k_p = jax.random.split(key)

    N, feat_dim, n_class = 20, 32, 2
    x = jax.random.normal(k_x, (1, N, feat_dim), jnp.float32)   # (1, N, feat_dim)
    params = init_params(k_p, feat_dim=feat_dim, n_class=n_class)

    # f32 path: small tile so the grid has multiple steps AND a ragged last tile
    # (exercises the online-softmax carry and padded-row masking).
    y_prob, xp, a_unnorm = wsi_feat_classifier(x, params, tile_n=8)
    jax.block_until_ready((y_prob, xp, a_unnorm))

    y_ref, xp_ref, au_ref = _ref_forward(x, params)
    assert y_prob.shape == (1, n_class)
    assert xp.shape == (N, n_class)
    assert a_unnorm.shape == (N, 1)
    assert jnp.allclose(y_prob, y_ref, atol=1e-5)
    assert jnp.allclose(xp, xp_ref, atol=1e-5)
    assert jnp.allclose(a_unnorm, au_ref, atol=1e-5)

    # bf16 matmul-operand path (f32 accumulation) — looser tolerance.
    y16, xp16, au16 = wsi_feat_classifier(x, params, tile_n=16, use_bf16=True)
    jax.block_until_ready((y16, xp16, au16))
    assert jnp.allclose(y16, y_ref, atol=2e-2)
    assert jnp.allclose(xp16, xp_ref, atol=2e-2)
    assert jnp.allclose(au16, au_ref, atol=2e-2)

    print("KERNEL_OK")
</pallas_src>

<mosaic_0001>
module attributes {stable_mosaic.version = 11 : i64} {
  func.func @_wsi_kernel(%arg0: i32, %arg1: memref<8x32xf32, #tpu.memory_space<vmem>>, %arg2: memref<32x256xf32, #tpu.memory_space<vmem>>, %arg3: memref<1x256xf32, #tpu.memory_space<vmem>>, %arg4: memref<256x64xf32, #tpu.memory_space<vmem>>, %arg5: memref<1x64xf32, #tpu.memory_space<vmem>>, %arg6: memref<64x128xf32, #tpu.memory_space<vmem>>, %arg7: memref<1x128xf32, #tpu.memory_space<vmem>>, %arg8: memref<1x128xf32, #tpu.memory_space<vmem>>, %arg9: memref<1x1xf32, #tpu.memory_space<vmem>>, %arg10: memref<64x2xf32, #tpu.memory_space<vmem>>, %arg11: memref<1x2xf32, #tpu.memory_space<vmem>>, %arg12: memref<1x2xf32, #tpu.memory_space<vmem>>, %arg13: memref<8x128xf32, #tpu.memory_space<vmem>>, %arg14: memref<1x1xf32, #tpu.memory_space<vmem>>, %arg15: memref<1x1xf32, #tpu.memory_space<vmem>>, %arg16: memref<1x64xf32, #tpu.memory_space<vmem>>) attributes {dimension_semantics = [#tpu.dimension_semantics<arbitrary>], iteration_bounds = array<i64: 3>, scalar_prefetch = 0 : i64, scratch_operands = 3 : i64, tpu.core_type = #tpu.core_type<tc>, window_params = [{transform_indices = @transform_0, window_bounds = array<i64: 8, 32>}, {pipeline_mode = #tpu.pipeline_mode<synchronous>, transform_indices = @transform_1, window_bounds = array<i64: 32, 256>}, {pipeline_mode = #tpu.pipeline_mode<synchronous>, transform_indices = @transform_2, window_bounds = array<i64: 1, 256>}, {pipeline_mode = #tpu.pipeline_mode<synchronous>, transform_indices = @transform_3, window_bounds = array<i64: 256, 64>}, {pipeline_mode = #tpu.pipeline_mode<synchronous>, transform_indices = @transform_4, window_bounds = array<i64: 1, 64>}, {pipeline_mode = #tpu.pipeline_mode<synchronous>, transform_indices = @transform_5, window_bounds = array<i64: 64, 128>}, {pipeline_mode = #tpu.pipeline_mode<synchronous>, transform_indices = @transform_6, window_bounds = array<i64: 1, 128>}, {pipeline_mode = #tpu.pipeline_mode<synchronous>, transform_indices = @transform_7, window_bounds = array<i64: 1, 128>}, {pipeline_mode = #tpu.pipeline_mode<synchronous>, transform_indices = @transform_8, window_bounds = array<i64: 1, 1>}, {pipeline_mode = #tpu.pipeline_mode<synchronous>, transform_indices = @transform_9, window_bounds = array<i64: 64, 2>}, {pipeline_mode = #tpu.pipeline_mode<synchronous>, transform_indices = @transform_10, window_bounds = array<i64: 1, 2>}, {pipeline_mode = #tpu.pipeline_mode<synchronous>, transform_indices = @transform_11, window_bounds = array<i64: 1, 2>}, {transform_indices = @transform_12, window_bounds = array<i64: 8, 128>}]} {
    %c0_i32 = arith.constant 0 : i32
    %0 = arith.cmpi eq, %arg0, %c0_i32 : i32
    %1 = arith.extui %0 : i1 to i32
    %c0_i32_0 = arith.constant 0 : i32
    %2 = arith.cmpi ne, %1, %c0_i32_0 : i32
    scf.if %2 {
      %cst_46 = arith.constant -1.000000e+30 : f32
      %81 = vector.broadcast %cst_46 : f32 to vector<1x1xf32>
      %c0_47 = arith.constant 0 : index
      %c0_48 = arith.constant 0 : index
      %82 = vector.load %arg14[%c0_47, %c0_48] : memref<1x1xf32, #tpu.memory_space<vmem>>, vector<1x1xf32>
      tpu.vector_store %arg14[%c0_47, %c0_48], %81 {strides = array<i32>} : memref<1x1xf32, #tpu.memory_space<vmem>>, vector<1x1xf32>,
      %cst_49 = arith.constant 0.000000e+00 : f32
      %83 = vector.broadcast %cst_49 : f32 to vector<1x1xf32>
      %c0_50 = arith.constant 0 : index
      %c0_51 = arith.constant 0 : index
      %84 = vector.load %arg15[%c0_50, %c0_51] : memref<1x1xf32, #tpu.memory_space<vmem>>, vector<1x1xf32>
      tpu.vector_store %arg15[%c0_50, %c0_51], %83 {strides = array<i32>} : memref<1x1xf32, #tpu.memory_space<vmem>>, vector<1x1xf32>,
      %cst_52 = arith.constant 0.000000e+00 : f32
      %85 = vector.broadcast %cst_52 : f32 to vector<1x64xf32>
      %c0_53 = arith.constant 0 : index
      %c0_54 = arith.constant 0 : index
      %86 = vector.load %arg16[%c0_53, %c0_54] : memref<1x64xf32, #tpu.memory_space<vmem>>, vector<1x64xf32>
      tpu.vector_store %arg16[%c0_53, %c0_54], %85 {strides = array<i32>} : memref<1x64xf32, #tpu.memory_space<vmem>>, vector<1x64xf32>,
    } else {
    }
    %c0 = arith.constant 0 : index
    %c0_1 = arith.constant 0 : index
    %3 = vector.load %arg1[%c0, %c0_1] : memref<8x32xf32, #tpu.memory_space<vmem>>, vector<8x32xf32>
    %c0_2 = arith.constant 0 : index
    %c0_3 = arith.constant 0 : index
    %4 = vector.load %arg2[%c0_2, %c0_3] : memref<32x256xf32, #tpu.memory_space<vmem>>, vector<32x256xf32>
    %cst = arith.constant dense<0.000000e+00> : vector<8x256xf32>
    %5 = tpu.matmul %3, %4, %cst {dimension_numbers = #tpu.dot_dimension_numbers<[1], [0], [0], [1], [0, 0, 1, 1], [], []>} : vector<8x32xf32>, vector<32x256xf32>, vector<8x256xf32> -> vector<8x256xf32>
    %c0_4 = arith.constant 0 : index
    %c0_5 = arith.constant 0 : index
    %6 = vector.load %arg3[%c0_4, %c0_5] : memref<1x256xf32, #tpu.memory_space<vmem>>, vector<1x256xf32>
    %7 = vector.broadcast %6 : vector<1x256xf32> to vector<8x256xf32>
    %8 = arith.addf %5, %7 : vector<8x256xf32>
    %cst_6 = arith.constant 0.000000e+00 : f32
    %9 = vector.broadcast %cst_6 : f32 to vector<8x256xf32>
    %10 = arith.maximumf %8, %9 : vector<8x256xf32>
    %c0_7 = arith.constant 0 : index
    %c0_8 = arith.constant 0 : index
    %11 = vector.load %arg4[%c0_7, %c0_8] : memref<256x64xf32, #tpu.memory_space<vmem>>, vector<256x64xf32>
    %cst_9 = arith.constant dense<0.000000e+00> : vector<8x64xf32>
    %12 = tpu.matmul %10, %11, %cst_9 {dimension_numbers = #tpu.dot_dimension_numbers<[1], [0], [0], [1], [0, 0, 1, 1], [], []>} : vector<8x256xf32>, vector<256x64xf32>, vector<8x64xf32> -> vector<8x64xf32>
    %c0_10 = arith.constant 0 : index
    %c0_11 = arith.constant 0 : index
    %13 = vector.load %arg5[%c0_10, %c0_11] : memref<1x64xf32, #tpu.memory_space<vmem>>, vector<1x64xf32>
    %14 = vector.broadcast %13 : vector<1x64xf32> to vector<8x64xf32>
    %15 = arith.addf %12, %14 : vector<8x64xf32>
    %cst_12 = arith.constant 0.000000e+00 : f32
    %16 = vector.broadcast %cst_12 : f32 to vector<8x64xf32>
    %17 = arith.maximumf %15, %16 : vector<8x64xf32>
    %c0_13 = arith.constant 0 : index
    %c0_14 = arith.constant 0 : index
    %18 = vector.load %arg6[%c0_13, %c0_14] : memref<64x128xf32, #tpu.memory_space<vmem>>, vector<64x128xf32>
    %cst_15 = arith.constant dense<0.000000e+00> : vector<8x128xf32>
    %19 = tpu.matmul %17, %18, %cst_15 {dimension_numbers = #tpu.dot_dimension_numbers<[1], [0], [0], [1], [0, 0, 1, 1], [], []>} : vector<8x64xf32>, vector<64x128xf32>, vector<8x128xf32> -> vector<8x128xf32>
    %c0_16 = arith.constant 0 : index
    %c0_17 = arith.constant 0 : index
    %20 = vector.load %arg7[%c0_16, %c0_17] : memref<1x128xf32, #tpu.memory_space<vmem>>, vector<1x128xf32>
    %21 = vector.broadcast %20 : vector<1x128xf32> to vector<8x128xf32>
    %22 = arith.addf %19, %21 : vector<8x128xf32>
    %23 = math.tanh %22 : vector<8x128xf32>
    %c0_18 = arith.constant 0 : index
    %c0_19 = arith.constant 0 : index
    %24 = vector.load %arg8[%c0_18, %c0_19] : memref<1x128xf32, #tpu.memory_space<vmem>>, vector<1x128xf32>
    %25 = vector.broadcast %24 : vector<1x128xf32> to vector<8x128xf32>
    %26 = arith.mulf %23, %25 : vector<8x128xf32>
    %cst_20 = arith.constant dense<0.000000e+00> : vector<8xf32>
    %27 = vector.multi_reduction <add>, %26, %cst_20 [1] : vector<8x128xf32> to vector<8xf32>
    %28 = vector.shape_cast %27 : vector<8xf32> to vector<8x1xf32>
    %c0_21 = arith.constant 0 : index
    %c0_22 = arith.constant 0 : index
    %29 = vector.load %arg9[%c0_21, %c0_22] : memref<1x1xf32, #tpu.memory_space<vmem>>, vector<1x1xf32>
    %30 = vector.broadcast %29 : vector<1x1xf32> to vector<8x1xf32>
    %31 = arith.addf %28, %30 : vector<8x1xf32>
    %32 = tpu.iota {dimensions = array<i32: 1>} : vector<8x128xi32>
    %c2_i32 = arith.constant 2 : i32
    %33 = vector.broadcast %c2_i32 : i32 to vector<8x128xi32>
    %34 = arith.cmpi slt, %32, %33 : vector<8x128xi32>
    %cst_23 = arith.constant 0.000000e+00 : f32
    %35 = vector.broadcast %cst_23 : f32 to vector<8x128xf32>
    %36 = arith.select %34, %22, %35 : vector<8x128xi1>, vector<8x128xf32>
    %c2_i32_24 = arith.constant 2 : i32
    %37 = vector.broadcast %c2_i32_24 : i32 to vector<8x128xi32>
    %38 = arith.cmpi eq, %32, %37 : vector<8x128xi32>
    %cst_25 = arith.constant 0.000000e+00 : f32
    %39 = vector.shape_cast %31 : vector<8x1xf32> to vector<8x1xf32>
    %40 = vector.broadcast %39 : vector<8x1xf32> to vector<8x128xf32>
    %41 = vector.broadcast %cst_25 : f32 to vector<8x128xf32>
    %42 = arith.select %38, %40, %41 : vector<8x128xi1>, vector<8x128xf32>
    %43 = arith.addf %36, %42 : vector<8x128xf32>
    %c0_26 = arith.constant 0 : index
    %c0_27 = arith.constant 0 : index
    %44 = vector.load %arg13[%c0_26, %c0_27] : memref<8x128xf32, #tpu.memory_space<vmem>>, vector<8x128xf32>
    tpu.vector_store %arg13[%c0_26, %c0_27], %43 {strides = array<i32>} : memref<8x128xf32, #tpu.memory_space<vmem>>, vector<8x128xf32>,
    %45 = tpu.iota {dimensions = array<i32: 0>} : vector<8x1xi32>
    %c8_i32 = arith.constant 8 : i32
    %46 = arith.muli %arg0, %c8_i32 : i32
    %47 = vector.broadcast %46 : i32 to vector<8x1xi32>
    %48 = arith.addi %45, %47 : vector<8x1xi32>
    %c20_i32 = arith.constant 20 : i32
    %49 = vector.broadcast %c20_i32 : i32 to vector<8x1xi32>
    %50 = arith.cmpi slt, %48, %49 : vector<8x1xi32>
    %cst_28 = arith.constant -1.000000e+30 : f32
    %51 = vector.broadcast %cst_28 : f32 to vector<8x1xf32>
    %52 = arith.select %50, %31, %51 : vector<8x1xi1>, vector<8x1xf32>
    %c0_29 = arith.constant 0 : index
    %c0_30 = arith.constant 0 : index
    %53 = vector.load %arg14[%c0_29, %c0_30] : memref<1x1xf32, #tpu.memory_space<vmem>>, vector<1x1xf32>
    %cst_31 = arith.constant dense<0xFF800000> : vector<1xf32>
    %54 = vector.multi_reduction <maximumf>, %52, %cst_31 [0] : vector<8x1xf32> to vector<1xf32>
    %55 = vector.shape_cast %54 : vector<1xf32> to vector<1x1xf32>
    %56 = arith.maximumf %53, %55 : vector<1x1xf32>
    %57 = arith.subf %53, %56 : vector<1x1xf32>
    %58 = math.exp %57 : vector<1x1xf32>
    %59 = vector.broadcast %56 : vector<1x1xf32> to vector<8x1xf32>
    %60 = arith.subf %52, %59 : vector<8x1xf32>
    %61 = math.exp %60 : vector<8x1xf32>
    %c0_32 = arith.constant 0 : index
    %c0_33 = arith.constant 0 : index
    %62 = vector.load %arg15[%c0_32, %c0_33] : memref<1x1xf32, #tpu.memory_space<vmem>>, vector<1x1xf32>
    %63 = arith.mulf %58, %62 : vector<1x1xf32>
    %cst_34 = arith.constant dense<0.000000e+00> : vector<1xf32>
    %64 = vector.multi_reduction <add>, %61, %cst_34 [0] : vector<8x1xf32> to vector<1xf32>
    %65 = vector.shape_cast %64 : vector<1xf32> to vector<1x1xf32>
    %66 = arith.addf %63, %65 : vector<1x1xf32>
    %c0_35 = arith.constant 0 : index
    %c0_36 = arith.constant 0 : index
    %67 = vector.load %arg15[%c0_35, %c0_36] : memref<1x1xf32, #tpu.memory_space<vmem>>, vector<1x1xf32>
    tpu.vector_store %arg15[%c0_35, %c0_36], %66 {strides = array<i32>} : memref<1x1xf32, #tpu.memory_space<vmem>>, vector<1x1xf32>,
    %c0_37 = arith.constant 0 : index
    %c0_38 = arith.constant 0 : index
    %68 = vector.load %arg16[%c0_37, %c0_38] : memref<1x64xf32, #tpu.memory_space<vmem>>, vector<1x64xf32>
    %69 = vector.broadcast %58 : vector<1x1xf32> to vector<1x64xf32>
    %70 = arith.mulf %69, %68 : vector<1x64xf32>
    %71 = vector.broadcast %61 : vector<8x1xf32> to vector<8x64xf32>
    %72 = arith.mulf %71, %17 : vector<8x64xf32>
    %cst_39 = arith.constant dense<0.000000e+00> : vector<64xf32>
    %73 = vector.multi_reduction <add>, %72, %cst_39 [0] : vector<8x64xf32> to vector<64xf32>
    %74 = vector.shape_cast %73 : vector<64xf32> to vector<1x64xf32>
    %75 = arith.addf %70, %74 : vector<1x64xf32>
    %c0_40 = arith.constant 0 : index
    %c0_41 = arith.constant 0 : index
    %76 = vector.load %arg16[%c0_40, %c0_41] : memref<1x64xf32, #tpu.memory_space<vmem>>, vector<1x64xf32>
    tpu.vector_store %arg16[%c0_40, %c0_41], %75 {strides = array<i32>} : memref<1x64xf32, #tpu.memory_space<vmem>>, vector<1x64xf32>,
    %c0_42 = arith.constant 0 : index
    %c0_43 = arith.constant 0 : index
    %77 = vector.load %arg14[%c0_42, %c0_43] : memref<1x1xf32, #tpu.memory_space<vmem>>, vector<1x1xf32>
    tpu.vector_store %arg14[%c0_42, %c0_43], %56 {strides = array<i32>} : memref<1x1xf32, #tpu.memory_space<vmem>>, vector<1x1xf32>,
    %c2_i32_44 = arith.constant 2 : i32
    %78 = arith.cmpi eq, %arg0, %c2_i32_44 : i32
    %79 = arith.extui %78 : i1 to i32
    %c0_i32_45 = arith.constant 0 : i32
    %80 = arith.cmpi ne, %79, %c0_i32_45 : i32
    scf.if %80 {
      %c0_46 = arith.constant 0 : index
      %c0_47 = arith.constant 0 : index
      %81 = vector.load %arg16[%c0_46, %c0_47] : memref<1x64xf32, #tpu.memory_space<vmem>>, vector<1x64xf32>
      %c0_48 = arith.constant 0 : index
      %c0_49 = arith.constant 0 : index
      %82 = vector.load %arg15[%c0_48, %c0_49] : memref<1x1xf32, #tpu.memory_space<vmem>>, vector<1x1xf32>
      %83 = tpu.reciprocal %82 : vector<1x1xf32> -> vector<1x1xf32>
      %84 = vector.broadcast %83 : vector<1x1xf32> to vector<1x64xf32>
      %85 = arith.mulf %81, %84 : vector<1x64xf32>
      %c0_50 = arith.constant 0 : index
      %c0_51 = arith.constant 0 : index
      %86 = vector.load %arg10[%c0_50, %c0_51] : memref<64x2xf32, #tpu.memory_space<vmem>>, vector<64x2xf32>
      %cst_52 = arith.constant dense<0.000000e+00> : vector<1x2xf32>
      %87 = tpu.matmul %85, %86, %cst_52 {dimension_numbers = #tpu.dot_dimension_numbers<[1], [0], [0], [1], [0, 0, 1, 1], [], []>} : vector<1x64xf32>, vector<64x2xf32>, vector<1x2xf32> -> vector<1x2xf32>
      %c0_53 = arith.constant 0 : index
      %c0_54 = arith.constant 0 : index
      %88 = vector.load %arg11[%c0_53, %c0_54] : memref<1x2xf32, #tpu.memory_space<vmem>>, vector<1x2xf32>
      %89 = arith.addf %87, %88 : vector<1x2xf32>
      %c0_55 = arith.constant 0 : index
      %c0_56 = arith.constant 0 : index
      %90 = vector.load %arg12[%c0_55, %c0_56] : memref<1x2xf32, #tpu.memory_space<vmem>>, vector<1x2xf32>
      tpu.vector_store %arg12[%c0_55, %c0_56], %89 {strides = array<i32>} : memref<1x2xf32, #tpu.memory_space<vmem>>, vector<1x2xf32>,
    } else {
    }
    return
  }
  func.func @transform_0(%arg0: i32) -> (i32, i32) {
    %c0_i32 = arith.constant 0 : i32
    %c0_i32_0 = arith.constant 0 : i32
    return %arg0, %c0_i32 : i32, i32
  }
  func.func @transform_1(%arg0: i32) -> (i32, i32) {
    %c0_i32 = arith.constant 0 : i32
    %c0_i32_0 = arith.constant 0 : i32
    %c0_i32_1 = arith.constant 0 : i32
    return %c0_i32, %c0_i32_0 : i32, i32
  }
  func.func @transform_2(%arg0: i32) -> (i32, i32) {
    %c0_i32 = arith.constant 0 : i32
    %c0_i32_0 = arith.constant 0 : i32
    %c0_i32_1 = arith.constant 0 : i32
    return %c0_i32, %c0_i32_0 : i32, i32
  }
  func.func @transform_3(%arg0: i32) -> (i32, i32) {
    %c0_i32 = arith.constant 0 : i32
    %c0_i32_0 = arith.constant 0 : i32
    %c0_i32_1 = arith.constant 0 : i32
    return %c0_i32, %c0_i32_0 : i32, i32
  }
  func.func @transform_4(%arg0: i32) -> (i32, i32) {
    %c0_i32 = arith.constant 0 : i32
    %c0_i32_0 = arith.constant 0 : i32
    %c0_i32_1 = arith.constant 0 : i32
    return %c0_i32, %c0_i32_0 : i32, i32
  }
  func.func @transform_5(%arg0: i32) -> (i32, i32) {
    %c0_i32 = arith.constant 0 : i32
    %c0_i32_0 = arith.constant 0 : i32
    %c0_i32_1 = arith.constant 0 : i32
    return %c0_i32, %c0_i32_0 : i32, i32
  }
  func.func @transform_6(%arg0: i32) -> (i32, i32) {
    %c0_i32 = arith.constant 0 : i32
    %c0_i32_0 = arith.constant 0 : i32
    %c0_i32_1 = arith.constant 0 : i32
    return %c0_i32, %c0_i32_0 : i32, i32
  }
  func.func @transform_7(%arg0: i32) -> (i32, i32) {
    %c0_i32 = arith.constant 0 : i32
    %c0_i32_0 = arith.constant 0 : i32
    %c0_i32_1 = arith.constant 0 : i32
    return %c0_i32, %c0_i32_0 : i32, i32
  }
  func.func @transform_8(%arg0: i32) -> (i32, i32) {
    %c0_i32 = arith.constant 0 : i32
    %c0_i32_0 = arith.constant 0 : i32
    %c0_i32_1 = arith.constant 0 : i32
    return %c0_i32, %c0_i32_0 : i32, i32
  }
  func.func @transform_9(%arg0: i32) -> (i32, i32) {
    %c0_i32 = arith.constant 0 : i32
    %c0_i32_0 = arith.constant 0 : i32
    %c0_i32_1 = arith.constant 0 : i32
    return %c0_i32, %c0_i32_0 : i32, i32
  }
  func.func @transform_10(%arg0: i32) -> (i32, i32) {
    %c0_i32 = arith.constant 0 : i32
    %c0_i32_0 = arith.constant 0 : i32
    %c0_i32_1 = arith.constant 0 : i32
    return %c0_i32, %c0_i32_0 : i32, i32
  }
  func.func @transform_11(%arg0: i32) -> (i32, i32) {
    %c0_i32 = arith.constant 0 : i32
    %c0_i32_0 = arith.constant 0 : i32
    %c0_i32_1 = arith.constant 0 : i32
    return %c0_i32, %c0_i32_0 : i32, i32
  }
  func.func @transform_12(%arg0: i32) -> (i32, i32) {
    %c0_i32 = arith.constant 0 : i32
    %c0_i32_0 = arith.constant 0 : i32
    return %arg0, %c0_i32 : i32, i32
  }
}

</mosaic_0001>

<llo_original>
// kernel: tpu_custom_call.1
$region0: #{tpu_custom_call.1}
  #allocation0 [shape = 'u32[]', space=smem, size = 0x4, offset = 0x4, fixed_abs, tag = 'smem constant byte address 0x4 - core index']
  #allocation1 [shape = 'u32[144,128]{1,0:T(1,128)}', space=vmem, size = 0x12000, scoped, tag = 'internal scratch']
  #allocation2 [shape = 'f32[1,1]{1,0:T(1,128)}', space=vmem, size = 0x200, scoped, tag = 'scratch operand']
  #allocation3 [shape = 'f32[1,1]{1,0:T(1,128)}', space=vmem, size = 0x200, scoped, tag = 'scratch operand']
  #allocation4 [shape = 'f32[1,64]{1,0:T(1,128)}', space=vmem, size = 0x200, scoped, tag = 'scratch operand']
  #allocation5 [shape = 'f32[1,1]{1,0:T(1,128)S(1)}', space=vmem, size = 0x200, scoped, tag = 'scoped memory for tpu_custom_call.1']
  %s0 = inlined_call_operand.vmem [shape: f32[24,32], index: 0, kind: input, shape index: {}]
  %s1 = inlined_call_operand.vmem [shape: f32[32,256], index: 1, kind: input, shape index: {}]
  %s2 = inlined_call_operand.vmem [shape: f32[1,256], index: 2, kind: input, shape index: {}]
  %s3 = inlined_call_operand.vmem [shape: f32[256,64], index: 3, kind: input, shape index: {}]
  %s4 = inlined_call_operand.vmem [shape: f32[1,64], index: 4, kind: input, shape index: {}]
  %s5 = inlined_call_operand.vmem [shape: f32[64,128], index: 5, kind: input, shape index: {}]
  %s6 = inlined_call_operand.vmem [shape: f32[1,128], index: 6, kind: input, shape index: {}]
  %s7 = inlined_call_operand.vmem [shape: f32[1,128], index: 7, kind: input, shape index: {}]
  %s8 = inlined_call_operand.<no memory space> [shape: f32[1,1], index: 8, kind: input, shape index: {}]
  %s9 = inlined_call_operand.vmem [shape: f32[64,2], index: 9, kind: input, shape index: {}]
  %s10 = inlined_call_operand.vmem [shape: f32[1,2], index: 10, kind: input, shape index: {}]
  %s11 = inlined_call_operand.hbm [shape: f32[1,2], index: 11, kind: output, shape index: {0}]
  %s12 = inlined_call_operand.hbm [shape: f32[24,128], index: 12, kind: output, shape index: {1}]
  %13 = xla_tuple %s11, %s12
  %s14 = sld [smem:[#allocation0]]
  $region93: #{tpu_custom_call.1} parent=0
    _
  %s16 = ssub.s32 1, %s14
  %s17 = scalar_select 0, %s16, %s14
  %v18 = vstv %s8
  %19 = vst [vmem:[#allocation5] sm:$0x1] %v18
  $region1: #{tpu_custom_call.1} parent=0
    #allocation6 [shape = 'u8[512]{0}', space=vmem, size = 0x400, scoped, tag = 'output window, operand 0, single buffered']
    #allocation7 [shape = 's32[2]{0}', space=sflag, size = 0x8, scoped, tag = 'scoped memory for tpu_custom_call.1']
    #allocation8 [shape = 'u8[8192]{0}', space=vmem, size = 0x2000, scoped, tag = 'output window, operand 1']
    #allocation9 [shape = 's32[2]{0}', space=sflag, size = 0x8, scoped, tag = 'scoped memory for tpu_custom_call.1']
    %20 = vsyncpa [#allocation7], 0
    %21 = vsyncpa [#allocation9], 0
    %s22 = scalar_lea.sflag [#allocation9], 1
    %23 = vsyncpa %s22, 0
    loop: start=0, step=1, limit=5
    $region2: #{tpu_custom_call.1} parent=1 // loop_pre_header
      _
    $region3: #{tpu_custom_call.1} parent=1 // loop_header
      %s25 = sphi 0, %s29
      %p26 = scmp.ge.s32.totalorder %s25, 5
      %s35 = sphi 0, %s37
      %s38 = sphi 0, %s35
      %s39 = sphi 0, %s38
      %s55 = sphi 0, %s39
      %s59 = sphi 0, %s59
      %s61 = sphi 0, %s59
      %s62 = sphi 0, %s61
      %s76 = sphi 0, %s62
      %s80 = sphi 0, %s80
      %s82 = sphi 0, %s80
      %s83 = sphi 0, %s82
      %s97 = sphi 0, %s83
      %s101 = sphi 0, %s101
      %s103 = sphi 0, %s101
      %s104 = sphi 0, %s103
      %s118 = sphi 0, %s104
      %s122 = sphi 0, %s122
      %s124 = sphi 0, %s122
      %s125 = sphi 0, %s124
      %s139 = sphi 0, %s125
      %s143 = sphi 0, %s143
      %s145 = sphi 0, %s143
      %s146 = sphi 0, %s145
      %s160 = sphi 0, %s146
      %s164 = sphi 0, %s164
      %s166 = sphi 0, %s164
      %s167 = sphi 0, %s166
      %s181 = sphi 0, %s167
      %s185 = sphi 0, %s185
      %s187 = sphi 0, %s185
      %s188 = sphi 0, %s187
      %s202 = sphi 0, %s188
      %s206 = sphi 0, %s206
      %s208 = sphi 0, %s206
      %s209 = sphi 0, %s208
      %s223 = sphi 0, %s209
      %s227 = sphi 0, %s227
      %s229 = sphi 0, %s227
      %s230 = sphi 0, %s229
      %s244 = sphi 0, %s230
      %s248 = sphi 0, %s248
      %s250 = sphi 0, %s248
      %s251 = sphi 0, %s250
      %s265 = sphi 0, %s251
      %s269 = sphi 0, %s269
      %s271 = sphi 0, %s269
      %s272 = sphi 0, %s271
      %s286 = sphi 0, %s272
      %s292 = sphi 0, %s294
      %s295 = sphi 0, %s292
      %s296 = sphi 0, %s295
      %s312 = sphi 0, %s296
    $region4: #{tpu_custom_call.1} parent=1 // loop_header_branch
      %28 = sbr.rel (%p26) target = $region8
    $region5: #{tpu_custom_call.1} parent=1 // loop_body
      %s30 = ssub.s32 %s25, 1
      %s31 = ssub.s32 %s25, 2
      %s32 = sadd.s32 %s25, 1
      %s33 = ssub.s32 %s25, %s32
      %p34 = scmp.eq.s32.totalorder %s33, 0
      %s36 = sadd.s32 %s35, 1
      %s37 = scalar_select %p34, %s35, %s36
      %p40 = pneg %p34
      %p41 = scmp.eq.s32.totalorder %s25, 2
      %p42 = por %p40, %p41
      %p43 = scmp.ne.s32.totalorder %s35, %s38
      %p44 = scmp.eq.s32.totalorder %s25, 0
      %p45 = por %p43, %p44
      %p46 = scmp.ne.s32.totalorder %s35, %s38
      %p47 = scmp.eq.s32.totalorder %s30, 2
      %p48 = por %p46, %p47
      %p49 = scmp.ne.s32.totalorder %s38, %s39
      %p50 = scmp.eq.s32.totalorder %s30, 0
      %p51 = por %p49, %p50
      %p52 = scmp.ne.s32.totalorder %s38, %s39
      %p53 = scmp.eq.s32.totalorder %s31, 2
      %p54 = por %p52, %p53
      %p56 = scmp.ne.s32.totalorder %s39, %s55
      %p57 = scmp.eq.s32.totalorder %s31, 0
      %p58 = por %p56, %p57
      %s60 = sadd.s32 %s59, 1
      %p63 = scmp.eq.s32.totalorder %s25, 2
      %p64 = scmp.ne.s32.totalorder %s59, %s61
      %p65 = scmp.eq.s32.totalorder %s25, 0
      %p66 = por %p64, %p65
      %p67 = scmp.ne.s32.totalorder %s59, %s61
      %p68 = scmp.eq.s32.totalorder %s30, 2
      %p69 = por %p67, %p68
      %p70 = scmp.ne.s32.totalorder %s61, %s62
      %p71 = scmp.eq.s32.totalorder %s30, 0
      %p72 = por %p70, %p71
      %p73 = scmp.ne.s32.totalorder %s61, %s62
      %p74 = scmp.eq.s32.totalorder %s31, 2
      %p75 = por %p73, %p74
      %p77 = scmp.ne.s32.totalorder %s62, %s76
      %p78 = scmp.eq.s32.totalorder %s31, 0
      %p79 = por %p77, %p78
      %s81 = sadd.s32 %s80, 1
      %p84 = scmp.eq.s32.totalorder %s25, 2
      %p85 = scmp.ne.s32.totalorder %s80, %s82
      %p86 = scmp.eq.s32.totalorder %s25, 0
      %p87 = por %p85, %p86
      %p88 = scmp.ne.s32.totalorder %s80, %s82
      %p89 = scmp.eq.s32.totalorder %s30, 2
      %p90 = por %p88, %p89
      %p91 = scmp.ne.s32.totalorder %s82, %s83
      %p92 = scmp.eq.s32.totalorder %s30, 0
      %p93 = por %p91, %p92
      %p94 = scmp.ne.s32.totalorder %s82, %s83
      %p95 = scmp.eq.s32.totalorder %s31, 2
      %p96 = por %p94, %p95
      %p98 = scmp.ne.s32.totalorder %s83, %s97
      %p99 = scmp.eq.s32.totalorder %s31, 0
      %p100 = por %p98, %p99
      %s102 = sadd.s32 %s101, 1
      %p105 = scmp.eq.s32.totalorder %s25, 2
      %p106 = scmp.ne.s32.totalorder %s101, %s103
      %p107 = scmp.eq.s32.totalorder %s25, 0
      %p108 = por %p106, %p107
      %p109 = scmp.ne.s32.totalorder %s101, %s103
      %p110 = scmp.eq.s32.totalorder %s30, 2
      %p111 = por %p109, %p110
      %p112 = scmp.ne.s32.totalorder %s103, %s104
      %p113 = scmp.eq.s32.totalorder %s30, 0
      %p114 = por %p112, %p113
      %p115 = scmp.ne.s32.totalorder %s103, %s104
      %p116 = scmp.eq.s32.totalorder %s31, 2
      %p117 = por %p115, %p116
      %p119 = scmp.ne.s32.totalorder %s104, %s118
      %p120 = scmp.eq.s32.totalorder %s31, 0
      %p121 = por %p119, %p120
      %s123 = sadd.s32 %s122, 1
      %p126 = scmp.eq.s32.totalorder %s25, 2
      %p127 = scmp.ne.s32.totalorder %s122, %s124
      %p128 = scmp.eq.s32.totalorder %s25, 0
      %p129 = por %p127, %p128
      %p130 = scmp.ne.s32.totalorder %s122, %s124
      %p131 = scmp.eq.s32.totalorder %s30, 2
      %p132 = por %p130, %p131
      %p133 = scmp.ne.s32.totalorder %s124, %s125
      %p134 = scmp.eq.s32.totalorder %s30, 0
      %p135 = por %p133, %p134
      %p136 = scmp.ne.s32.totalorder %s124, %s125
      %p137 = scmp.eq.s32.totalorder %s31, 2
      %p138 = por %p136, %p137
      %p140 = scmp.ne.s32.totalorder %s125, %s139
      %p141 = scmp.eq.s32.totalorder %s31, 0
      %p142 = por %p140, %p141
      %s144 = sadd.s32 %s143, 1
      %p147 = scmp.eq.s32.totalorder %s25, 2
      %p148 = scmp.ne.s32.totalorder %s143, %s145
      %p149 = scmp.eq.s32.totalorder %s25, 0
      %p150 = por %p148, %p149
      %p151 = scmp.ne.s32.totalorder %s143, %s145
      %p152 = scmp.eq.s32.totalorder %s30, 2
      %p153 = por %p151, %p152
      %p154 = scmp.ne.s32.totalorder %s145, %s146
      %p155 = scmp.eq.s32.totalorder %s30, 0
      %p156 = por %p154, %p155
      %p157 = scmp.ne.s32.totalorder %s145, %s146
      %p158 = scmp.eq.s32.totalorder %s31, 2
      %p159 = por %p157, %p158
      %p161 = scmp.ne.s32.totalorder %s146, %s160
      %p162 = scmp.eq.s32.totalorder %s31, 0
      %p163 = por %p161, %p162
      %s165 = sadd.s32 %s164, 1
      %p168 = scmp.eq.s32.totalorder %s25, 2
      %p169 = scmp.ne.s32.totalorder %s164, %s166
      %p170 = scmp.eq.s32.totalorder %s25, 0
      %p171 = por %p169, %p170
      %p172 = scmp.ne.s32.totalorder %s164, %s166
      %p173 = scmp.eq.s32.totalorder %s30, 2
      %p174 = por %p172, %p173
      %p175 = scmp.ne.s32.totalorder %s166, %s167
      %p176 = scmp.eq.s32.totalorder %s30, 0
      %p177 = por %p175, %p176
      %p178 = scmp.ne.s32.totalorder %s166, %s167
      %p179 = scmp.eq.s32.totalorder %s31, 2
      %p180 = por %p178, %p179
      %p182 = scmp.ne.s32.totalorder %s167, %s181
      %p183 = scmp.eq.s32.totalorder %s31, 0
      %p184 = por %p182, %p183
      %s186 = sadd.s32 %s185, 1
      %p189 = scmp.eq.s32.totalorder %s25, 2
      %p190 = scmp.ne.s32.totalorder %s185, %s187
      %p191 = scmp.eq.s32.totalorder %s25, 0
      %p192 = por %p190, %p191
      %p193 = scmp.ne.s32.totalorder %s185, %s187
      %p194 = scmp.eq.s32.totalorder %s30, 2
      %p195 = por %p193, %p194
      %p196 = scmp.ne.s32.totalorder %s187, %s188
      %p197 = scmp.eq.s32.totalorder %s30, 0
      %p198 = por %p196, %p197
      %p199 = scmp.ne.s32.totalorder %s187, %s188
      %p200 = scmp.eq.s32.totalorder %s31, 2
      %p201 = por %p199, %p200
      %p203 = scmp.ne.s32.totalorder %s188, %s202
      %p204 = scmp.eq.s32.totalorder %s31, 0
      %p205 = por %p203, %p204
      %s207 = sadd.s32 %s206, 1
      %p210 = scmp.eq.s32.totalorder %s25, 2
      %p211 = scmp.ne.s32.totalorder %s206, %s208
      %p212 = scmp.eq.s32.totalorder %s25, 0
      %p213 = por %p211, %p212
      %p214 = scmp.ne.s32.totalorder %s206, %s208
      %p215 = scmp.eq.s32.totalorder %s30, 2
      %p216 = por %p214, %p215
      %p217 = scmp.ne.s32.totalorder %s208, %s209
      %p218 = scmp.eq.s32.totalorder %s30, 0
      %p219 = por %p217, %p218
      %p220 = scmp.ne.s32.totalorder %s208, %s209
      %p221 = scmp.eq.s32.totalorder %s31, 2
      %p222 = por %p220, %p221
      %p224 = scmp.ne.s32.totalorder %s209, %s223
      %p225 = scmp.eq.s32.totalorder %s31, 0
      %p226 = por %p224, %p225
      %s228 = sadd.s32 %s227, 1
      %p231 = scmp.eq.s32.totalorder %s25, 2
      %p232 = scmp.ne.s32.totalorder %s227, %s229
      %p233 = scmp.eq.s32.totalorder %s25, 0
      %p234 = por %p232, %p233
      %p235 = scmp.ne.s32.totalorder %s227, %s229
      %p236 = scmp.eq.s32.totalorder %s30, 2
      %p237 = por %p235, %p236
      %p238 = scmp.ne.s32.totalorder %s229, %s230
      %p239 = scmp.eq.s32.totalorder %s30, 0
      %p240 = por %p238, %p239
      %p241 = scmp.ne.s32.totalorder %s229, %s230
      %p242 = scmp.eq.s32.totalorder %s31, 2
      %p243 = por %p241, %p242
      %p245 = scmp.ne.s32.totalorder %s230, %s244
      %p246 = scmp.eq.s32.totalorder %s31, 0
      %p247 = por %p245, %p246
      %s249 = sadd.s32 %s248, 1
      %p252 = scmp.eq.s32.totalorder %s25, 2
      %p253 = scmp.ne.s32.totalorder %s248, %s250
      %p254 = scmp.eq.s32.totalorder %s25, 0
      %p255 = por %p253, %p254
      %p256 = scmp.ne.s32.totalorder %s248, %s250
      %p257 = scmp.eq.s32.totalorder %s30, 2
      %p258 = por %p256, %p257
      %p259 = scmp.ne.s32.totalorder %s250, %s251
      %p260 = scmp.eq.s32.totalorder %s30, 0
      %p261 = por %p259, %p260
      %p262 = scmp.ne.s32.totalorder %s250, %s251
      %p263 = scmp.eq.s32.totalorder %s31, 2
      %p264 = por %p262, %p263
      %p266 = scmp.ne.s32.totalorder %s251, %s265
      %p267 = scmp.eq.s32.totalorder %s31, 0
      %p268 = por %p266, %p267
      %s270 = sadd.s32 %s269, 1
      %p273 = scmp.eq.s32.totalorder %s25, 2
      %p274 = scmp.ne.s32.totalorder %s269, %s271
      %p275 = scmp.eq.s32.totalorder %s25, 0
      %p276 = por %p274, %p275
      %p277 = scmp.ne.s32.totalorder %s269, %s271
      %p278 = scmp.eq.s32.totalorder %s30, 2
      %p279 = por %p277, %p278
      %p280 = scmp.ne.s32.totalorder %s271, %s272
      %p281 = scmp.eq.s32.totalorder %s30, 0
      %p282 = por %p280, %p281
      %p283 = scmp.ne.s32.totalorder %s271, %s272
      %p284 = scmp.eq.s32.totalorder %s31, 2
      %p285 = por %p283, %p284
      %p287 = scmp.ne.s32.totalorder %s272, %s286
      %p288 = scmp.eq.s32.totalorder %s31, 0
      %p289 = por %p287, %p288
      %s290 = ssub.s32 %s25, %s32
      %p291 = scmp.eq.s32.totalorder %s290, 0
      %s293 = sadd.s32 %s292, 1
      %s294 = scalar_select %p291, %s292, %s293
      %p297 = pneg %p291
      %p298 = scmp.eq.s32.totalorder %s25, 2
      %p299 = por %p297, %p298
      %p300 = scmp.ne.s32.totalorder %s292, %s295
      %p301 = scmp.eq.s32.totalorder %s25, 0
      %p302 = por %p300, %p301
      %p303 = scmp.ne.s32.totalorder %s292, %s295
      %p304 = scmp.eq.s32.totalorder %s30, 2
      %p305 = por %p303, %p304
      %p306 = scmp.ne.s32.totalorder %s295, %s296
      %p307 = scmp.eq.s32.totalorder %s30, 0
      %p308 = por %p306, %p307
      %p309 = scmp.ne.s32.totalorder %s295, %s296
      %p310 = scmp.eq.s32.totalorder %s31, 2
      %p311 = por %p309, %p310
      %p313 = scmp.ne.s32.totalorder %s296, %s312
      %p314 = scmp.eq.s32.totalorder %s31, 0
      %p315 = por %p313, %p314
      %p316 = scmp.le.s32.totalorder 1, %s25
      %p317 = scmp.lt.s32.totalorder %s25, 4
      %p318 = pnand %p316, %p317
      %p319 = pneg %p318
      // Predicated region
      $region9: #{tpu_custom_call.1} parent=5 // pred_check
        _
      $region10: #{tpu_custom_call.1} parent=5 // pred_check_branch
        %321 = sbr.rel (%p318) target = $region12
      $region11: #{tpu_custom_call.1} parent=5 // pred_region
        %s322 = ssub.s32 %s25, 1
        // Predicated region
        $region13: #{tpu_custom_call.1} parent=11 // pred_check
          %p323 = pneg %p72
        $region14: #{tpu_custom_call.1} parent=11 // pred_check_branch
          %325 = sbr.rel (%p323) target = $region16
        $region15: #{tpu_custom_call.1} parent=11 // pred_region
          _
        $region16: #{tpu_custom_call.1} parent=11 // pred_fallthru
          _
        // Predicated region
        $region17: #{tpu_custom_call.1} parent=11 // pred_check
          %p326 = pneg %p93
        $region18: #{tpu_custom_call.1} parent=11 // pred_check_branch
          %328 = sbr.rel (%p326) target = $region20
        $region19: #{tpu_custom_call.1} parent=11 // pred_region
          _
        $region20: #{tpu_custom_call.1} parent=11 // pred_fallthru
          _
        // Predicated region
        $region21: #{tpu_custom_call.1} parent=11 // pred_check
          %p329 = pneg %p114
        $region22: #{tpu_custom_call.1} parent=11 // pred_check_branch
          %331 = sbr.rel (%p329) target = $region24
        $region23: #{tpu_custom_call.1} parent=11 // pred_region
          _
        $region24: #{tpu_custom_call.1} parent=11 // pred_fallthru
          _
        // Predicated region
        $region25: #{tpu_custom_call.1} parent=11 // pred_check
          %p332 = pneg %p135
        $region26: #{tpu_custom_call.1} parent=11 // pred_check_branch
          %334 = sbr.rel (%p332) target = $region28
        $region27: #{tpu_custom_call.1} parent=11 // pred_region
          _
        $region28: #{tpu_custom_call.1} parent=11 // pred_fallthru
          _
        // Predicated region
        $region29: #{tpu_custom_call.1} parent=11 // pred_check
          %p335 = pneg %p156
        $region30: #{tpu_custom_call.1} parent=11 // pred_check_branch
          %337 = sbr.rel (%p335) target = $region32
        $region31: #{tpu_custom_call.1} parent=11 // pred_region
          _
        $region32: #{tpu_custom_call.1} parent=11 // pred_fallthru
          _
        // Predicated region
        $region33: #{tpu_custom_call.1} parent=11 // pred_check
          %p338 = pneg %p177
        $region34: #{tpu_custom_call.1} parent=11 // pred_check_branch
          %340 = sbr.rel (%p338) target = $region36
        $region35: #{tpu_custom_call.1} parent=11 // pred_region
          _
        $region36: #{tpu_custom_call.1} parent=11 // pred_fallthru
          _
        // Predicated region
        $region37: #{tpu_custom_call.1} parent=11 // pred_check
          %p341 = pneg %p198
        $region38: #{tpu_custom_call.1} parent=11 // pred_check_branch
          %343 = sbr.rel (%p341) target = $region40
        $region39: #{tpu_custom_call.1} parent=11 // pred_region
          _
        $region40: #{tpu_custom_call.1} parent=11 // pred_fallthru
          _
        // Predicated region
        $region41: #{tpu_custom_call.1} parent=11 // pred_check
          %p344 = pneg %p219
        $region42: #{tpu_custom_call.1} parent=11 // pred_check_branch
          %346 = sbr.rel (%p344) target = $region44
        $region43: #{tpu_custom_call.1} parent=11 // pred_region
          _
        $region44: #{tpu_custom_call.1} parent=11 // pred_fallthru
          _
        // Predicated region
        $region45: #{tpu_custom_call.1} parent=11 // pred_check
          %p347 = pneg %p240
        $region46: #{tpu_custom_call.1} parent=11 // pred_check_branch
          %349 = sbr.rel (%p347) target = $region48
        $region47: #{tpu_custom_call.1} parent=11 // pred_region
          _
        $region48: #{tpu_custom_call.1} parent=11 // pred_fallthru
          _
        // Predicated region
        $region49: #{tpu_custom_call.1} parent=11 // pred_check
          %p350 = pneg %p261
        $region50: #{tpu_custom_call.1} parent=11 // pred_check_branch
          %352 = sbr.rel (%p350) target = $region52
        $region51: #{tpu_custom_call.1} parent=11 // pred_region
          _
        $region52: #{tpu_custom_call.1} parent=11 // pred_fallthru
          _
      $region12: #{tpu_custom_call.1} parent=5 // pred_fallthru
        _
      %p353 = scmp.lt.s32.totalorder %s25, 3
      // Predicated region
      $region53: #{tpu_custom_call.1} parent=5 // pred_check
        %p354 = pneg %p353
      $region54: #{tpu_custom_call.1} parent=5 // pred_check_branch
        %356 = sbr.rel (%p354) target = $region56
      $region55: #{tpu_custom_call.1} parent=5 // pred_region
        // Predicated region
        $region57: #{tpu_custom_call.1} parent=55 // pred_check
          %p357 = pneg %p45
        $region58: #{tpu_custom_call.1} parent=55 // pred_check_branch
          %359 = sbr.rel (%p357) target = $region60
        $region59: #{tpu_custom_call.1} parent=55 // pred_region
          %p360 = scmp.lt.s32.totalorder %s25, 2
          %s361 = scalar_select %p360, %s25, 2
          %s362 = smul.addr %s361, 8
          %s363 = scalar_lea.vmem %s0, %s362
        $region60: #{tpu_custom_call.1} parent=55 // pred_fallthru
          _
      $region56: #{tpu_custom_call.1} parent=5 // pred_fallthru
        _
      %p364 = scmp.le.s32.totalorder 1, %s25
      %p365 = scmp.lt.s32.totalorder %s25, 4
      %p366 = pnand %p364, %p365
      %p367 = pneg %p366
      // Predicated region
      $region61: #{tpu_custom_call.1} parent=5 // pred_check
        _
      $region62: #{tpu_custom_call.1} parent=5 // pred_check_branch
        %369 = sbr.rel (%p366) target = $region64
      $region63: #{tpu_custom_call.1} parent=5 // pred_region
        %s370 = ssub.s32 %s25, 1
        %p371 = scmp.lt.s32.totalorder %s30, 2
        %s372 = scalar_select %p371, %s30, 2
        %s373 = smul.addr %s372, 8
        %s374 = scalar_lea.vmem %s0, %s373
        %p375 = pneg %p51
        %p376 = pneg %p48
        %p377 = pneg %p72
        %p378 = pneg %p69
        %p379 = pneg %p93
        %p380 = pneg %p90
        %p381 = pneg %p114
        %p382 = pneg %p111
        %p383 = pneg %p135
        %p384 = pneg %p132
        %p385 = pneg %p156
        %p386 = pneg %p153
        %p387 = pneg %p177
        %p388 = pneg %p174
        %p389 = pneg %p198
        %p390 = pneg %p195
        %p391 = pneg %p219
        %p392 = pneg %p216
        %p393 = pneg %p240
        %p394 = pneg %p237
        %p395 = pneg %p261
        %p396 = pneg %p258
        %p397 = pneg %p282
        %p398 = pneg %p279
        %p399 = pneg %p308
        %p400 = pneg %p305
        %s401 = sand.u32 %s295, 1
        %s402 = scalar_lea.sflag [#allocation9], %s401
        %s403 = sand.u32 %s295, 1
        %s404 = smul.addr %s403, 8
        %s405 = scalar_lea.vmem [#allocation8], %s404
        %p406 = scmp.lt.s32.totalorder %s30, 2
        %s407 = scalar_select %p406, %s30, 2
        %s408 = smul.addr %s407, 8
        %s409 = scalar_lea.vmem %s0, %s408
        %p410 = scmp.eq.s32.totalorder %s30, 0
        // Predicated region
        $region65: #{tpu_custom_call.1} parent=63 // pred_check
          %p411 = pneg %p410
        $region66: #{tpu_custom_call.1} parent=63 // pred_check_branch
          %413 = sbr.rel (%p411) target = $region68
        $region67: #{tpu_custom_call.1} parent=63 // pred_region
          %vm414 = vcmask 0
          %415 = vst.msk [vmem:[#allocation2] sm:$0x1] %vm414, -1e+30
          %416 = vst.msk [vmem:[#allocation3] sm:$0x1] %vm414, 0.0
          %vm417 = vcmask 516096
          %418 = vst.msk [vmem:[#allocation4] sm:$0x1] %vm417, 0.0
        $region68: #{tpu_custom_call.1} parent=63 // pred_fallthru
          _
        %v419 = vld [vmem:[%s409] sm:$0xff]
        %v420 = vld [vmem:[%s1] sm:$0xff]
        %v421 = vld [vmem:[%s1 + $0x8] sm:$0xff]
        %v422 = vld [vmem:[%s1 + $0x10] sm:$0xff]
        %v423 = vld [vmem:[%s1 + $0x18] sm:$0xff]
        %v424 = vld [vmem:[%s1 + $0x20] sm:$0xff]
        %v425 = vld [vmem:[%s1 + $0x28] sm:$0xff]
        %v426 = vld [vmem:[%s1 + $0x30] sm:$0xff]
        %v427 = vld [vmem:[%s1 + $0x38] sm:$0xff]
        %v428 = vld [vmem:[%s2] sm:$0x3]
        %v430 = vlaneseq
        %v431 = vshrl.u32 %v430, 7
        %v432 = vsub.s32 0, %v431
        %v433 = vrot.slane %v428, %v432
        %v434 = vlaneseq
        %v435 = vshrl.u32 %v434, 7
        %v436 = vsub.s32 1, %v435
        %v437 = vrot.slane %v428, %v436
        %vm440 = vcmask 261120
        %v442 = vsel %vm440, %v419, 0
        %444 = vmatprep.subr.mxu0 0.0
        %445 = vmatpush1.msra.mxu0 0.0
        %446 = vmatprep.subr.mxu0 0.0
        %447 = vmatpush1.msra.mxu0 0.0
        %448 = vmatprep.subr.mxu0 0.0
        %449 = vmatpush1.msra.mxu0 0.0
        %450 = vmatprep.subr.mxu0 0.0
        %451 = vmatpush1.msra.mxu0 0.0
        %452 = vmatprep.subr.mxu0 0.0
        %453 = vmatpush1.msra.mxu0 0.0
        %454 = vmatprep.subr.mxu0 0.0
        %455 = vmatpush1.msra.mxu0 0.0
        %456 = vmatprep.subr.mxu0 0.0
        %457 = vmatpush1.msra.mxu0 0.0
        %458 = vmatprep.subr.mxu0 0.0
        %459 = vmatpush1.msra.mxu0 0.0
        %460 = vmatprep.subr.mxu0 0.0
        %461 = vmatpush1.msra.mxu0 0.0
        %462 = vmatprep.subr.mxu0 0.0
        %463 = vmatpush1.msra.mxu0 0.0
        %464 = vmatprep.subr.mxu0 0.0
        %465 = vmatpush1.msra.mxu0 0.0
        %466 = vmatprep.subr.mxu0 0.0
        %467 = vmatpush1.msra.mxu0 0.0
        %468 = vmatprep.subr.mxu0 %v427
        %469 = vmatpush1.msra.mxu0 %v426
        %470 = vmatprep.subr.mxu0 %v425
        %471 = vmatpush1.msra.mxu0 %v424
        %472 = vmatprep.subr.mxu0 %v423
        %473 = vmatpush1.msra.mxu0 %v422
        %474 = vmatprep.subr.mxu0 %v421
        %475 = vmatpush1.msra.mxu0 %v420
        %476 = vmatprep.subr.mxu0 0.0
        %477 = vmatpush2.msra.mxu0 0.0
        %478 = vmatprep.subr.mxu0 0.0
        %479 = vmatpush2.msra.mxu0 0.0
        %480 = vmatprep.subr.mxu0 0.0
        %481 = vmatpush2.msra.mxu0 0.0
        %482 = vmatprep.subr.mxu0 0.0
        %483 = vmatpush2.msra.mxu0 0.0
        %484 = vmatprep.subr.mxu0 0.0
        %485 = vmatpush2.msra.mxu0 0.0
        %486 = vmatprep.subr.mxu0 0.0
        %487 = vmatpush2.msra.mxu0 0.0
        %488 = vmatprep.subr.mxu0 0.0
        %489 = vmatpush2.msra.mxu0 0.0
        %490 = vmatprep.subr.mxu0 0.0
        %491 = vmatpush2.msra.mxu0 0.0
        %492 = vmatprep.subr.mxu0 0.0
        %493 = vmatpush2.msra.mxu0 0.0
        %494 = vmatprep.subr.mxu0 0.0
        %495 = vmatpush2.msra.mxu0 0.0
        %496 = vmatprep.subr.mxu0 0.0
        %497 = vmatpush2.msra.mxu0 0.0
        %498 = vmatprep.subr.mxu0 0.0
        %499 = vmatpush2.msra.mxu0 0.0
        %500 = vmatprep.subr.mxu0 0.0
        %501 = vmatpush2.msra.mxu0 0.0
        %502 = vmatprep.subr.mxu0 0.0
        %503 = vmatpush2.msra.mxu0 0.0
        %504 = vmatprep.subr.mxu0 0.0
        %505 = vmatpush2.msra.mxu0 0.0
        %506 = vmatprep.subr.mxu0 0.0
        %507 = vmatpush2.msra.mxu0 0.0
        %508 = vmatprep.mubr.f32.mxu0 0.0
        %509 = vmatmul.mubr.f32.gmra.mxu0 %v442
        %v510 = vpop.f32.mrf.mxu0
        %v511 = vadd.f32 %v433, %v510
        %v512 = vpop.f32.mrf.mxu0
        %v513 = vadd.f32 %v437, %v512
        %514 = vdwg.mxu0
        %v515 = vmax.f32 %v511, 0.0
        %v516 = vmax.f32 %v513, 0.0
        %v517 = vld [vmem:[%s3] sm:$0xff]
        %v518 = vld [vmem:[%s3 + $0x8] sm:$0xff]
        %v519 = vld [vmem:[%s3 + $0x10] sm:$0xff]
        %v520 = vld [vmem:[%s3 + $0x18] sm:$0xff]
        %v521 = vld [vmem:[%s3 + $0x20] sm:$0xff]
        %v522 = vld [vmem:[%s3 + $0x28] sm:$0xff]
        %v523 = vld [vmem:[%s3 + $0x30] sm:$0xff]
        %v524 = vld [vmem:[%s3 + $0x38] sm:$0xff]
        %v525 = vld [vmem:[%s3 + $0x40] sm:$0xff]
        %v526 = vld [vmem:[%s3 + $0x48] sm:$0xff]
        %v527 = vld [vmem:[%s3 + $0x50] sm:$0xff]
        %v528 = vld [vmem:[%s3 + $0x58] sm:$0xff]
        %v529 = vld [vmem:[%s3 + $0x60] sm:$0xff]
        %v530 = vld [vmem:[%s3 + $0x68] sm:$0xff]
        %v531 = vld [vmem:[%s3 + $0x70] sm:$0xff]
        %v532 = vld [vmem:[%s3 + $0x78] sm:$0xff]
        %v533 = vld [vmem:[%s3 + $0x80] sm:$0xff]
        %v534 = vld [vmem:[%s3 + $0x88] sm:$0xff]
        %v535 = vld [vmem:[%s3 + $0x90] sm:$0xff]
        %v536 = vld [vmem:[%s3 + $0x98] sm:$0xff]
        %v537 = vld [vmem:[%s3 + $0xa0] sm:$0xff]
        %v538 = vld [vmem:[%s3 + $0xa8] sm:$0xff]
        %v539 = vld [vmem:[%s3 + $0xb0] sm:$0xff]
        %v540 = vld [vmem:[%s3 + $0xb8] sm:$0xff]
        %v541 = vld [vmem:[%s3 + $0xc0] sm:$0xff]
        %v542 = vld [vmem:[%s3 + $0xc8] sm:$0xff]
        %v543 = vld [vmem:[%s3 + $0xd0] sm:$0xff]
        %v544 = vld [vmem:[%s3 + $0xd8] sm:$0xff]
        %v545 = vld [vmem:[%s3 + $0xe0] sm:$0xff]
        %v546 = vld [vmem:[%s3 + $0xe8] sm:$0xff]
        %v547 = vld [vmem:[%s3 + $0xf0] sm:$0xff]
        %v548 = vld [vmem:[%s3 + $0xf8] sm:$0xff]
        %v549 = vld [vmem:[%s4] sm:$0x1]
        %v551 = vlaneseq
        %v552 = vshrl.u32 %v551, 7
        %v553 = vsub.s32 0, %v552
        %v554 = vrot.slane %v549, %v553
        %556 = vmatprep.subr.mxu0 0.0
        %557 = vmatpush1.msra.mxu0 %v532
        %558 = vmatprep.subr.mxu0 0.0
        %559 = vmatpush1.msra.mxu0 %v531
        %560 = vmatprep.subr.mxu0 0.0
        %561 = vmatpush1.msra.mxu0 %v530
        %562 = vmatprep.subr.mxu0 0.0
        %563 = vmatpush1.msra.mxu0 %v529
        %564 = vmatprep.subr.mxu0 0.0
        %565 = vmatpush1.msra.mxu0 %v528
        %566 = vmatprep.subr.mxu0 0.0
        %567 = vmatpush1.msra.mxu0 %v527
        %568 = vmatprep.subr.mxu0 0.0
        %569 = vmatpush1.msra.mxu0 %v526
        %570 = vmatprep.subr.mxu0 0.0
        %571 = vmatpush1.msra.mxu0 %v525
        %572 = vmatprep.subr.mxu0 0.0
        %573 = vmatpush1.msra.mxu0 %v524
        %574 = vmatprep.subr.mxu0 0.0
        %575 = vmatpush1.msra.mxu0 %v523
        %576 = vmatprep.subr.mxu0 0.0
        %577 = vmatpush1.msra.mxu0 %v522
        %578 = vmatprep.subr.mxu0 0.0
        %579 = vmatpush1.msra.mxu0 %v521
        %580 = vmatprep.subr.mxu0 0.0
        %581 = vmatpush1.msra.mxu0 %v520
        %582 = vmatprep.subr.mxu0 0.0
        %583 = vmatpush1.msra.mxu0 %v519
        %584 = vmatprep.subr.mxu0 0.0
        %585 = vmatpush1.msra.mxu0 %v518
        %586 = vmatprep.subr.mxu0 0.0
        %587 = vmatpush1.msra.mxu0 %v517
        %588 = vmatprep.subr.mxu0 0.0
        %589 = vmatpush2.msra.mxu0 %v548
        %590 = vmatprep.subr.mxu0 0.0
        %591 = vmatpush2.msra.mxu0 %v547
        %592 = vmatprep.subr.mxu0 0.0
        %593 = vmatpush2.msra.mxu0 %v546
        %594 = vmatprep.subr.mxu0 0.0
        %595 = vmatpush2.msra.mxu0 %v545
        %596 = vmatprep.subr.mxu0 0.0
        %597 = vmatpush2.msra.mxu0 %v544
        %598 = vmatprep.subr.mxu0 0.0
        %599 = vmatpush2.msra.mxu0 %v543
        %600 = vmatprep.subr.mxu0 0.0
        %601 = vmatpush2.msra.mxu0 %v542
        %602 = vmatprep.subr.mxu0 0.0
        %603 = vmatpush2.msra.mxu0 %v541
        %604 = vmatprep.subr.mxu0 0.0
        %605 = vmatpush2.msra.mxu0 %v540
        %606 = vmatprep.subr.mxu0 0.0
        %607 = vmatpush2.msra.mxu0 %v539
        %608 = vmatprep.subr.mxu0 0.0
        %609 = vmatpush2.msra.mxu0 %v538
        %610 = vmatprep.subr.mxu0 0.0
        %611 = vmatpush2.msra.mxu0 %v537
        %612 = vmatprep.subr.mxu0 0.0
        %613 = vmatpush2.msra.mxu0 %v536
        %614 = vmatprep.subr.mxu0 0.0
        %615 = vmatpush2.msra.mxu0 %v535
        %616 = vmatprep.subr.mxu0 0.0
        %617 = vmatpush2.msra.mxu0 %v534
        %618 = vmatprep.subr.mxu0 0.0
        %619 = vmatpush2.msra.mxu0 %v533
        %620 = vmatprep.mubr.f32.mxu0 %v516
        %621 = vmatmul.mubr.f32.gmra.mxu0 %v515
        %v622 = vpop.f32.mrf.mxu0
        %v623 = vadd.f32 %v554, %v622
        %v624 = vpop.f32.mrf.mxu0
        %625 = vdwg.mxu0
        %v626 = vmax.f32 %v623, 0.0
        %v627 = vld [vmem:[%s5] sm:$0xff]
        %v628 = vld [vmem:[%s5 + $0x8] sm:$0xff]
        %v629 = vld [vmem:[%s5 + $0x10] sm:$0xff]
        %v630 = vld [vmem:[%s5 + $0x18] sm:$0xff]
        %v631 = vld [vmem:[%s5 + $0x20] sm:$0xff]
        %v632 = vld [vmem:[%s5 + $0x28] sm:$0xff]
        %v633 = vld [vmem:[%s5 + $0x30] sm:$0xff]
        %v634 = vld [vmem:[%s5 + $0x38] sm:$0xff]
        %v635 = vld [vmem:[%s6] sm:$0x1]
        %v637 = vlaneseq
        %v638 = vshrl.u32 %v637, 7
        %v639 = vsub.s32 0, %v638
        %v640 = vrot.slane %v635, %v639
        %vm642 = vcmask 523264
        %v644 = vsel %vm642, %v626, 0
        %646 = vmatprep.subr.mxu0 0.0
        %647 = vmatpush1.msra.mxu0 0.0
        %648 = vmatprep.subr.mxu0 0.0
        %649 = vmatpush1.msra.mxu0 0.0
        %650 = vmatprep.subr.mxu0 0.0
        %651 = vmatpush1.msra.mxu0 0.0
        %652 = vmatprep.subr.mxu0 0.0
        %653 = vmatpush1.msra.mxu0 0.0
        %654 = vmatprep.subr.mxu0 0.0
        %655 = vmatpush1.msra.mxu0 0.0
        %656 = vmatprep.subr.mxu0 0.0
        %657 = vmatpush1.msra.mxu0 0.0
        %658 = vmatprep.subr.mxu0 0.0
        %659 = vmatpush1.msra.mxu0 0.0
        %660 = vmatprep.subr.mxu0 0.0
        %661 = vmatpush1.msra.mxu0 0.0
        %662 = vmatprep.subr.mxu0 0.0
        %663 = vmatpush1.msra.mxu0 %v634
        %664 = vmatprep.subr.mxu0 0.0
        %665 = vmatpush1.msra.mxu0 %v633
        %666 = vmatprep.subr.mxu0 0.0
        %667 = vmatpush1.msra.mxu0 %v632
        %668 = vmatprep.subr.mxu0 0.0
        %669 = vmatpush1.msra.mxu0 %v631
        %670 = vmatprep.subr.mxu0 0.0
        %671 = vmatpush1.msra.mxu0 %v630
        %672 = vmatprep.subr.mxu0 0.0
        %673 = vmatpush1.msra.mxu0 %v629
        %674 = vmatprep.subr.mxu0 0.0
        %675 = vmatpush1.msra.mxu0 %v628
        %676 = vmatprep.subr.mxu0 0.0
        %677 = vmatpush1.msra.mxu0 %v627
        %678 = vmatprep.subr.mxu0 0.0
        %679 = vmatpush2.msra.mxu0 0.0
        %680 = vmatprep.subr.mxu0 0.0
        %681 = vmatpush2.msra.mxu0 0.0
        %682 = vmatprep.subr.mxu0 0.0
        %683 = vmatpush2.msra.mxu0 0.0
        %684 = vmatprep.subr.mxu0 0.0
        %685 = vmatpush2.msra.mxu0 0.0
        %686 = vmatprep.subr.mxu0 0.0
        %687 = vmatpush2.msra.mxu0 0.0
        %688 = vmatprep.subr.mxu0 0.0
        %689 = vmatpush2.msra.mxu0 0.0
        %690 = vmatprep.subr.mxu0 0.0
        %691 = vmatpush2.msra.mxu0 0.0
        %692 = vmatprep.subr.mxu0 0.0
        %693 = vmatpush2.msra.mxu0 0.0
        %694 = vmatprep.subr.mxu0 0.0
        %695 = vmatpush2.msra.mxu0 0.0
        %696 = vmatprep.subr.mxu0 0.0
        %697 = vmatpush2.msra.mxu0 0.0
        %698 = vmatprep.subr.mxu0 0.0
        %699 = vmatpush2.msra.mxu0 0.0
        %700 = vmatprep.subr.mxu0 0.0
        %701 = vmatpush2.msra.mxu0 0.0
        %702 = vmatprep.subr.mxu0 0.0
        %703 = vmatpush2.msra.mxu0 0.0
        %704 = vmatprep.subr.mxu0 0.0
        %705 = vmatpush2.msra.mxu0 0.0
        %706 = vmatprep.subr.mxu0 0.0
        %707 = vmatpush2.msra.mxu0 0.0
        %708 = vmatprep.subr.mxu0 0.0
        %709 = vmatpush2.msra.mxu0 0.0
        %710 = vmatprep.mubr.f32.mxu0 0.0
        %711 = vmatmul.mubr.f32.gmra.mxu0 %v644
        %v712 = vpop.f32.mrf.mxu0
        %v713 = vadd.f32 %v640, %v712
        %v714 = vpop.f32.mrf.mxu0
        %715 = vdwg.mxu0
        %v716 = vtanh.pop %v713
        %v717 = vld [vmem:[%s7] sm:$0x1]
        %v719 = vlaneseq
        %v720 = vshrl.u32 %v719, 7
        %v721 = vsub.s32 0, %v720
        %v722 = vrot.slane %v717, %v721
        %v724 = vmul.f32 %v716, %v722
        %725 = vadd.xlane.f32.xlu0 %v724
        %v726 = vpop.xlane.xlu0 %725
        %v727 = vld [vmem:[#allocation5] sm:$0x1]
        %v729 = vlaneseq
        %v730 = vshrl.u32 %v729, 7
        %v731 = vsub.s32 0, %v730
        %v732 = vrot.slane %v727, %v731
        %v734 = vadd.f32 %v726, %v732
        %v735 = vlaneseq
        %v736 = vand.u32 %v735, 127
        %vm737 = vcmp.lt.s32.totalorder %v736, 2
        %v738 = vsel %vm737, %v713, 0.0
        %vm739 = vcmp.eq.s32.totalorder %v736, 2
        %741 = vset.pattern.permute.xlu0 0
        %742 = vperm.xlu0 %741, %v734
        %v743 = vpop.permute.xlu0 %742
        %v745 = vsel %vm739, %v743, 0.0
        %v746 = vadd.f32 %v738, %v745
        %747 = vst [vmem:[%s405] sm:$0xff] %v746
        %v748 = vlaneseq
        %v749 = vshrl.u32 %v748, 7
        %s750 = smul.u32 %s30, 8
        %v751 = vstv %s750
        %v752 = vadd.s32 %v749, %v751
        %vm753 = vcmp.lt.s32.totalorder %v752, 20
        %v754 = vsel %vm753, %v734, -1e+30
        %v755 = vld [vmem:[#allocation2] sm:$0x1]
        %vm756 = vcmask 7168
        %v757 = vsel %vm756, %v754, -inf
        %v758 = vrot.slane %v757, 4
        %v759 = vmax.f32 %v757, %v758
        %v760 = vrot.slane %v759, 2
        %v761 = vmax.f32 %v759, %v760
        %v762 = vrot.slane %v761, 1
        %v763 = vmax.f32 %v761, %v762
        %v764 = vmax.f32 %v755, %v763
        %v765 = vsub.f32 %v755, %v764
        %v766 = vmul.f32 %v765, 1.442695
        %v767 = vpow.pop %v766
        %v769 = vlaneseq
        %v770 = vshrl.u32 %v769, 7
        %v771 = vsub.s32 0, %v770
        %v772 = vrot.slane %v764, %v771
        %v774 = vsub.f32 %v754, %v772
        %v775 = vmul.f32 %v774, 1.442695
        %v776 = vpow.pop %v775
        %v777 = vld [vmem:[#allocation3] sm:$0x1]
        %v778 = vmul.f32 %v767, %v777
        %v779 = vsel %vm756, %v776, 0.0
        %v780 = vrot.slane %v779, 4
        %v781 = vadd.f32 %v779, %v780
        %v782 = vrot.slane %v781, 2
        %v783 = vadd.f32 %v781, %v782
        %v784 = vrot.slane %v783, 1
        %v785 = vadd.f32 %v783, %v784
        %v786 = vadd.f32 %v778, %v785
        %vm787 = vcmask 0
        %788 = vst.msk [vmem:[#allocation3] sm:$0x1] %vm787, %v786
        %v789 = vld [vmem:[#allocation4] sm:$0x1]
        %791 = vset.pattern.permute.xlu0 0
        %792 = vperm.xlu0 %791, %v767
        %v793 = vpop.permute.xlu0 %792
        %v795 = vlaneseq
        %v796 = vshrl.u32 %v795, 7
        %v797 = vsub.s32 0, %v796
        %v798 = vrot.slane %v793, %v797
        %v799 = vmul.f32 %v798, %v789
        %801 = vset.pattern.permute.xlu0 0
        %802 = vperm.xlu0 %801, %v776
        %v803 = vpop.permute.xlu0 %802
        %v805 = vmul.f32 %v803, %v626
        %v806 = vsel %vm642, %v805, 0.0
        %v807 = vrot.slane %v806, 4
        %v808 = vadd.f32 %v806, %v807
        %v809 = vrot.slane %v808, 2
        %v810 = vadd.f32 %v808, %v809
        %v811 = vrot.slane %v810, 1
        %v812 = vadd.f32 %v810, %v811
        %v813 = vadd.f32 %v799, %v812
        %vm814 = vcmask 516096
        %815 = vst.msk [vmem:[#allocation4] sm:$0x1] %vm814, %v813
        %816 = vst.msk [vmem:[#allocation2] sm:$0x1] %vm787, %v764
        %p817 = scmp.eq.s32.totalorder %s30, 2
        // Predicated region
        $region69: #{tpu_custom_call.1} parent=63 // pred_check
          %p818 = pneg %p817
        $region70: #{tpu_custom_call.1} parent=63 // pred_check_branch
          %820 = sbr.rel (%p818) target = $region72
        $region71: #{tpu_custom_call.1} parent=63 // pred_region
          %v821 = vld [vmem:[#allocation4] sm:$0x1]
          %v822 = vld [vmem:[#allocation3] sm:$0x1]
          %v823 = vrcp.pop %v822
          %825 = vset.pattern.permute.xlu0 0
          %826 = vperm.xlu0 %825, %v823
          %v827 = vpop.permute.xlu0 %826
          %v829 = vlaneseq
          %v830 = vshrl.u32 %v829, 7
          %v831 = vsub.s32 0, %v830
          %v832 = vrot.slane %v827, %v831
          %v833 = vmul.f32 %v821, %v832
          %v834 = vld [vmem:[%s9] sm:$0xff]
          %v835 = vld [vmem:[%s9 + $0x8] sm:$0xff]
          %v836 = vld [vmem:[%s9 + $0x10] sm:$0xff]
          %v837 = vld [vmem:[%s9 + $0x18] sm:$0xff]
          %v838 = vld [vmem:[%s9 + $0x20] sm:$0xff]
          %v839 = vld [vmem:[%s9 + $0x28] sm:$0xff]
          %v840 = vld [vmem:[%s9 + $0x30] sm:$0xff]
          %v841 = vld [vmem:[%s9 + $0x38] sm:$0xff]
          %v842 = vld [vmem:[%s10] sm:$0x1]
          %v844 = vsel %vm642, %v833, 0
          %846 = vmatprep.subr.mxu0 0.0
          %847 = vmatpush1.msra.mxu0 0.0
          %848 = vmatprep.subr.mxu0 0.0
          %849 = vmatpush1.msra.mxu0 0.0
          %850 = vmatprep.subr.mxu0 0.0
          %851 = vmatpush1.msra.mxu0 0.0
          %852 = vmatprep.subr.mxu0 0.0
          %853 = vmatpush1.msra.mxu0 0.0
          %854 = vmatprep.subr.mxu0 0.0
          %855 = vmatpush1.msra.mxu0 0.0
          %856 = vmatprep.subr.mxu0 0.0
          %857 = vmatpush1.msra.mxu0 0.0
          %858 = vmatprep.subr.mxu0 0.0
          %859 = vmatpush1.msra.mxu0 0.0
          %860 = vmatprep.subr.mxu0 0.0
          %861 = vmatpush1.msra.mxu0 0.0
          %862 = vmatprep.subr.mxu0 0.0
          %863 = vmatpush1.msra.mxu0 %v841
          %864 = vmatprep.subr.mxu0 0.0
          %865 = vmatpush1.msra.mxu0 %v840
          %866 = vmatprep.subr.mxu0 0.0
          %867 = vmatpush1.msra.mxu0 %v839
          %868 = vmatprep.subr.mxu0 0.0
          %869 = vmatpush1.msra.mxu0 %v838
          %870 = vmatprep.subr.mxu0 0.0
          %871 = vmatpush1.msra.mxu0 %v837
          %872 = vmatprep.subr.mxu0 0.0
          %873 = vmatpush1.msra.mxu0 %v836
          %874 = vmatprep.subr.mxu0 0.0
          %875 = vmatpush1.msra.mxu0 %v835
          %876 = vmatprep.subr.mxu0 0.0
          %877 = vmatpush1.msra.mxu0 %v834
          %878 = vmatprep.subr.mxu0 0.0
          %879 = vmatpush2.msra.mxu0 0.0
          %880 = vmatprep.subr.mxu0 0.0
          %881 = vmatpush2.msra.mxu0 0.0
          %882 = vmatprep.subr.mxu0 0.0
          %883 = vmatpush2.msra.mxu0 0.0
          %884 = vmatprep.subr.mxu0 0.0
          %885 = vmatpush2.msra.mxu0 0.0
          %886 = vmatprep.subr.mxu0 0.0
          %887 = vmatpush2.msra.mxu0 0.0
          %888 = vmatprep.subr.mxu0 0.0
          %889 = vmatpush2.msra.mxu0 0.0
          %890 = vmatprep.subr.mxu0 0.0
          %891 = vmatpush2.msra.mxu0 0.0
          %892 = vmatprep.subr.mxu0 0.0
          %893 = vmatpush2.msra.mxu0 0.0
          %894 = vmatprep.subr.mxu0 0.0
          %895 = vmatpush2.msra.mxu0 0.0
          %896 = vmatprep.subr.mxu0 0.0
          %897 = vmatpush2.msra.mxu0 0.0
          %898 = vmatprep.subr.mxu0 0.0
          %899 = vmatpush2.msra.mxu0 0.0
          %900 = vmatprep.subr.mxu0 0.0
          %901 = vmatpush2.msra.mxu0 0.0
          %902 = vmatprep.subr.mxu0 0.0
          %903 = vmatpush2.msra.mxu0 0.0
          %904 = vmatprep.subr.mxu0 0.0
          %905 = vmatpush2.msra.mxu0 0.0
          %906 = vmatprep.subr.mxu0 0.0
          %907 = vmatpush2.msra.mxu0 0.0
          %908 = vmatprep.subr.mxu0 0.0
          %909 = vmatpush2.msra.mxu0 0.0
          %910 = vmatprep.mubr.f32.mxu0 0.0
          %911 = vmatmul.mubr.f32.gmra.mxu0 %v844
          %v912 = vpop.f32.mrf.mxu0
          %v913 = vadd.f32 %v842, %v912
          %v914 = vpop.f32.mrf.mxu0
          %915 = vdwg.mxu0
          %vm916 = vcmask 8192
          %917 = vst.msk [vmem:[#allocation6] sm:$0x1] %vm916, %v913
        $region72: #{tpu_custom_call.1} parent=63 // pred_fallthru
          _
        %s918 = sand.u32 %s295, 1
        %s919 = scalar_lea.sflag [#allocation9], %s918
        %s920 = sand.u32 %s295, 1
        %s921 = smul.addr %s920, 8
        %s922 = scalar_lea.vmem [#allocation8], %s921
        // Predicated region
        $region73: #{tpu_custom_call.1} parent=63 // pred_check
          %p923 = pneg %p279
        $region74: #{tpu_custom_call.1} parent=63 // pred_check_branch
          %925 = sbr.rel (%p923) target = $region76
        $region75: #{tpu_custom_call.1} parent=63 // pred_region
          %s927 = ssub.s32 16, 16
          %928 = vsyncadd [#allocation7], %s927
          %s930 = sshll.u32 [#allocation6], 4
          %s931 = int_to_ptr.vmem [resolvable:$true] %s930
          %933 = dma.vmem_to_hbm [thread:$0]  %s931, 16, %s11, [#allocation7]
        $region76: #{tpu_custom_call.1} parent=63 // pred_fallthru
          _
        // Predicated region
        $region77: #{tpu_custom_call.1} parent=63 // pred_check
          %p934 = pneg %p305
        $region78: #{tpu_custom_call.1} parent=63 // pred_check_branch
          %936 = sbr.rel (%p934) target = $region80
        $region79: #{tpu_custom_call.1} parent=63 // pred_region
          %s938 = ssub.s32 128, 128
          %939 = vsyncadd %s919, %s938
          %s940 = smul.addr %s30, 128
          %s941 = scalar_lea.hbm %s12, %s940
          %s943 = sshll.u32 %s922, 4
          %s944 = int_to_ptr.vmem [resolvable:$true] %s943
          %946 = dma.vmem_to_hbm [thread:$0]  %s944, 128, %s941, %s919
        $region80: #{tpu_custom_call.1} parent=63 // pred_fallthru
          _
        // Predicated region
        $region81: #{tpu_custom_call.1} parent=63 // pred_check
          %p947 = pneg %p279
        $region82: #{tpu_custom_call.1} parent=63 // pred_check_branch
          %949 = sbr.rel (%p947) target = $region84
        $region83: #{tpu_custom_call.1} parent=63 // pred_region
          %950 = dma.done [#allocation7], 16
        $region84: #{tpu_custom_call.1} parent=63 // pred_fallthru
          _
      $region64: #{tpu_custom_call.1} parent=5 // pred_fallthru
        _
      %p951 = scmp.le.s32.totalorder 2, %s25
      // Predicated region
      $region85: #{tpu_custom_call.1} parent=5 // pred_check
        %p952 = pneg %p951
      $region86: #{tpu_custom_call.1} parent=5 // pred_check_branch
        %954 = sbr.rel (%p952) target = $region88
      $region87: #{tpu_custom_call.1} parent=5 // pred_region
        %s955 = ssub.s32 %s25, 2
        // Predicated region
        $region89: #{tpu_custom_call.1} parent=87 // pred_check
          %p956 = pneg %p311
        $region90: #{tpu_custom_call.1} parent=87 // pred_check_branch
          %958 = sbr.rel (%p956) target = $region92
        $region91: #{tpu_custom_call.1} parent=87 // pred_region
          %s959 = sand.u32 %s296, 1
          %s960 = scalar_lea.sflag [#allocation9], %s959
          %s961 = sand.u32 %s296, 1
          %s962 = smul.addr %s961, 8
          %s963 = scalar_lea.vmem [#allocation8], %s962
          %964 = dma.done %s960, 128
        $region92: #{tpu_custom_call.1} parent=87 // pred_fallthru
          _
      $region88: #{tpu_custom_call.1} parent=5 // pred_fallthru
        _
    $region6: #{tpu_custom_call.1} parent=1 // loop_footer
      %s29 = sadd.s32 1, %s25
    $region7: #{tpu_custom_call.1} parent=1 // loop_footer_branch
      %24 = sbr.rel target = $region3
    $region8: #{tpu_custom_call.1} parent=1 // loop_exit
      _
    %965 = vsyncpa [#allocation7], 1
    %s966 = scalar_lea.sflag [#allocation7], 1
    %967 = vsyncpa %s966, 1
    %968 = vsyncpa [#allocation9], 1
    %s969 = scalar_lea.sflag [#allocation9], 1
    %970 = vsyncpa %s969, 1

</llo_original>
